<compile_context>
chip_gen: v7x
topology: tpu7x:2x2x1
jax: 0.10.0
libtpu: 0.0.40
codegen_flags: <defaults>
</compile_context>

<pallas_src>
import numpy as np
import jax
import jax.numpy as jnp
from jax.experimental import pallas as pl
from jax.experimental.pallas import tpu as pltpu


# Problem sizes.
N, C, H, W = 2, 4, 16, 16
HW = H * W            # 256 -> multiple of 128: lane-dense end-to-end
KSIZE, PAD = 7, 3


def spatial_attn_kernel(x_ref, a_ref, cb_ref, att_ref):
    # x_ref:  (N, C, HW)   f32   whole batch
    # a_ref:  (2*HW, HW)   bf16  K-stacked unrolled 7x7 conv
    # cb_ref: (1,)         f32   conv bias (SMEM)
    # att_ref:(N, HW)      f32
    x = x_ref[...]                                         # (N, C, HW)

    # Channel pooling (small sublane reduction over C).
    savg = jnp.mean(x, axis=1)                             # (N, HW)
    smax = jnp.max(x, axis=1)                              # (N, HW)

    # K-stack the two pooled maps -> one fused MXU matmul with K = 2*HW.
    lhs = jnp.concatenate([savg, smax], axis=1).astype(jnp.bfloat16)   # (N, 2*HW)

    pre = jnp.dot(lhs, a_ref[...],
                  preferred_element_type=jnp.float32)      # (N, HW) f32
    att_ref[...] = jax.nn.sigmoid(pre + cb_ref[0]).astype(att_ref.dtype)


def build_conv_matrix(conv_w, h, w):
    """Unroll the 7x7 (pad=3) conv over the HxW grid into one K-stacked matrix.

    pre_flat[n, p] = sum_q savg[n, q] * A[q, p] + sum_q smax[n, q] * A[hw + q, p]
    """
    hw = h * w
    cw = np.asarray(conv_w, dtype=np.float32)              # (1, 2, 7, 7)
    A = np.zeros((2 * hw, hw), np.float32)
    for i in range(h):
        for j in range(w):
            p = i * w + j
            for dy in range(KSIZE):
                for dx in range(KSIZE):
                    ii, jj = i + dy - PAD, j + dx - PAD
                    if 0 <= ii < h and 0 <= jj < w:
                        q = ii * w + jj
                        A[q, p] += cw[0, 0, dy, dx]         # avg-channel weights
                        A[hw + q, p] += cw[0, 1, dy, dx]    # max-channel weights
    # TODO(synk): the unrolled matrix is O(HW^2); for large H, W (esp. v7x's
    # 64 MiB VMEM) tile the output columns or replace the matmul with 49
    # pltpu.roll-shifted FMAs instead.
    return jnp.asarray(A, dtype=jnp.bfloat16)               # bf16: MXU-native


def spatial_attention_pallas(x, A_stacked, conv_b):
    n, c, h, w = x.shape
    hw = h * w
    x2 = x.reshape(n, c, hw)

    cost = pl.CostEstimate(
        flops=2 * n * (2 * hw) * hw + 4 * n * c * hw,       # matmul + pooling
        transcendentals=n * hw,                             # sigmoid
        bytes_accessed=A_stacked.size * 2 + x2.size * 4 + n * hw * 4 + 4,
    )

    att = pl.pallas_call(
        spatial_attn_kernel,
        out_shape=jax.ShapeDtypeStruct((n, hw), jnp.float32),
        grid=(1,),                                          # single step: no per-step overhead
        in_specs=[
            pl.BlockSpec((n, c, hw), lambda i: (0, 0, 0)),          # x (whole batch)
            pl.BlockSpec((2 * hw, hw), lambda i: (0, 0)),           # conv matrix
            pl.BlockSpec(memory_space=pltpu.MemorySpace.SMEM),      # conv bias (1,)
        ],
        out_specs=pl.BlockSpec((n, hw), lambda i: (0, 0)),
        compiler_params=pltpu.CompilerParams(
            dimension_semantics=("arbitrary",)),
        cost_estimate=cost,
    )(x2, A_stacked, conv_b)

    return att.reshape(n, 1, h, w)


def spatial_attention_reference(x, conv_w, conv_b):
    """Pure-JAX reference matching the PyTorch SpatialAttentionModule (NCHW)."""
    savg = x.mean(axis=1, keepdims=True)                    # (N,1,H,W)
    smax = x.max(axis=1, keepdims=True)                     # (N,1,H,W)
    s = jnp.concatenate([savg, smax], axis=1)               # (N,2,H,W)
    att = jax.lax.conv_general_dilated(
        s, conv_w, window_strides=(1, 1), padding=((PAD, PAD), (PAD, PAD)),
        dimension_numbers=("NCHW", "OIHW", "NCHW")) + conv_b.reshape(1, 1, 1, 1)
    return jax.nn.sigmoid(att)


if __name__ == "__main__":
    key = jax.random.PRNGKey(0)
    kx, kw, kb = jax.random.split(key, 3)

    x = jax.random.normal(kx, (N, C, H, W), jnp.float32)
    # Conv2d(in=2, out=1, kernel=7, padding=3) with bias.
    conv_w = jax.random.normal(kw, (1, 2, 7, 7), jnp.float32) * 0.1
    conv_b = jax.random.normal(kb, (1,), jnp.float32) * 0.1

    A_stacked = build_conv_matrix(conv_w, H, W)

    att = spatial_attention_pallas(x, A_stacked, conv_b)
    att = jax.block_until_ready(att)

    att_ref = spatial_attention_reference(x, conv_w, conv_b)
    # bf16 conv matrix / LHS with f32 accumulation -> slightly relaxed tolerance.
    np.testing.assert_allclose(np.asarray(att), np.asarray(att_ref),
                               rtol=2e-3, atol=5e-3)

    print("KERNEL_OK")
</pallas_src>

<mosaic_0001>
module attributes {stable_mosaic.version = 11 : i64} {
  func.func @spatial_attn_kernel(%arg0: i32, %arg1: memref<2x4x256xf32, #tpu.memory_space<vmem>>, %arg2: memref<512x256xbf16, #tpu.memory_space<vmem>>, %arg3: memref<1xf32, #tpu.memory_space<smem>>, %arg4: memref<2x256xf32, #tpu.memory_space<vmem>>) attributes {dimension_semantics = [#tpu.dimension_semantics<arbitrary>], iteration_bounds = array<i64: 1>, scalar_prefetch = 0 : i64, scratch_operands = 0 : i64, tpu.core_type = #tpu.core_type<tc>, window_params = [{pipeline_mode = #tpu.pipeline_mode<synchronous>, transform_indices = @transform_0, window_bounds = array<i64: 2, 4, 256>}, {pipeline_mode = #tpu.pipeline_mode<synchronous>, transform_indices = @transform_1, window_bounds = array<i64: 512, 256>}, {transform_indices = @transform_2, window_bounds = array<i64: 1>}, {pipeline_mode = #tpu.pipeline_mode<synchronous>, transform_indices = @transform_3, window_bounds = array<i64: 2, 256>}]} {
    %c0 = arith.constant 0 : index
    %c0_0 = arith.constant 0 : index
    %c0_1 = arith.constant 0 : index
    %0 = vector.load %arg1[%c0, %c0_0, %c0_1] : memref<2x4x256xf32, #tpu.memory_space<vmem>>, vector<2x4x256xf32>
    %cst = arith.constant dense<0.000000e+00> : vector<2x256xf32>
    %1 = vector.multi_reduction <add>, %0, %cst [1] : vector<2x4x256xf32> to vector<2x256xf32>
    %cst_2 = arith.constant 4.000000e+00 : f32
    %2 = vector.broadcast %cst_2 : f32 to vector<2x256xf32>
    %3 = arith.divf %1, %2 : vector<2x256xf32>
    %cst_3 = arith.constant dense<0xFF800000> : vector<2x256xf32>
    %4 = vector.multi_reduction <maximumf>, %0, %cst_3 [1] : vector<2x4x256xf32> to vector<2x256xf32>
    %5 = tpu.concatenate %3, %4 in 1 : vector<2x256xf32>, vector<2x256xf32> -> vector<2x512xf32>
    %6 = arith.truncf %5 : vector<2x512xf32> to vector<2x512xbf16>
    %c0_4 = arith.constant 0 : index
    %c0_5 = arith.constant 0 : index
    %7 = vector.load %arg2[%c0_4, %c0_5] : memref<512x256xbf16, #tpu.memory_space<vmem>>, vector<512x256xbf16>
    %cst_6 = arith.constant dense<0.000000e+00> : vector<2x256xf32>
    %8 = tpu.matmul %6, %7, %cst_6 {dimension_numbers = #tpu.dot_dimension_numbers<[1], [0], [0], [1], [0, 0, 1, 1], [], []>} : vector<2x512xbf16>, vector<512x256xbf16>, vector<2x256xf32> -> vector<2x256xf32>
    %c0_7 = arith.constant 0 : index
    %9 = memref.load %arg3[%c0_7] : memref<1xf32, #tpu.memory_space<smem>>
    %10 = vector.broadcast %9 : f32 to vector<2x256xf32>
    %11 = arith.addf %8, %10 : vector<2x256xf32>
    %12 = arith.negf %11 : vector<2x256xf32>
    %13 = math.exp %12 : vector<2x256xf32>
    %cst_8 = arith.constant 1.000000e+00 : f32
    %14 = vector.broadcast %cst_8 : f32 to vector<2x256xf32>
    %15 = arith.addf %14, %13 : vector<2x256xf32>
    %16 = arith.divf %14, %15 : vector<2x256xf32>
    %c0_9 = arith.constant 0 : index
    %c0_10 = arith.constant 0 : index
    %17 = vector.load %arg4[%c0_9, %c0_10] : memref<2x256xf32, #tpu.memory_space<vmem>>, vector<2x256xf32>
    tpu.vector_store %arg4[%c0_9, %c0_10], %16 {strides = array<i32>} : memref<2x256xf32, #tpu.memory_space<vmem>>, vector<2x256xf32>,
    return
  }
  func.func @transform_0(%arg0: i32) -> (i32, i32, i32) {
    %c0_i32 = arith.constant 0 : i32
    %c0_i32_0 = arith.constant 0 : i32
    %c0_i32_1 = arith.constant 0 : i32
    %c0_i32_2 = arith.constant 0 : i32
    return %c0_i32, %c0_i32_0, %c0_i32_1 : i32, i32, i32
  }
  func.func @transform_1(%arg0: i32) -> (i32, i32) {
    %c0_i32 = arith.constant 0 : i32
    %c0_i32_0 = arith.constant 0 : i32
    %c0_i32_1 = arith.constant 0 : i32
    return %c0_i32, %c0_i32_0 : i32, i32
  }
  func.func @transform_2(%arg0: i32) -> i32 {
    %c0_i32 = arith.constant 0 : i32
    %c0_i32_0 = arith.constant 0 : i32
    return %c0_i32 : i32
  }
  func.func @transform_3(%arg0: i32) -> (i32, i32) {
    %c0_i32 = arith.constant 0 : i32
    %c0_i32_0 = arith.constant 0 : i32
    %c0_i32_1 = arith.constant 0 : i32
    return %c0_i32, %c0_i32_0 : i32, i32
  }
}

</mosaic_0001>

<llo_original>
// kernel: tpu_custom_call.1
$region0: #{tpu_custom_call.1}
  #allocation0 [shape = 'u32[]', space=smem, size = 0x4, offset = 0x4, fixed_abs, tag = 'smem constant byte address 0x4 - core index']
  #allocation1 [shape = 'u32[144,128]{1,0:T(1,128)}', space=vmem, size = 0x12000, scoped, tag = 'internal scratch']
  #allocation2 [shape = 'f32[1]{0:T(128)S(6)}', space=smem, size = 0x200, scoped, tag = 'scoped memory for tpu_custom_call.1']
  %s0 = inlined_call_operand.hbm [shape: f32[2,4,256], index: 0, kind: input, shape index: {}]
  %s1 = inlined_call_operand.hbm [shape: bf16[512,256], index: 1, kind: input, shape index: {}]
  %s2 = inlined_call_operand.<no memory space> [shape: f32[1], index: 2, kind: input, shape index: {}]
  %s3 = inlined_call_operand.hbm [shape: f32[2,256], index: 3, kind: output, shape index: {}]
  %s4 = sld [smem:[#allocation0]]
  $region30: #{tpu_custom_call.1} parent=0
    _
  %s6 = ssub.s32 1, %s4
  %s7 = scalar_select 0, %s6, %s4
  %8 = sst [smem:[#allocation2]] %s2
  $region1: #{tpu_custom_call.1} parent=0
    #allocation3 [shape = 'u8[8192]{0}', space=vmem, size = 0x2000, scoped, tag = 'input window, operand 0, single buffered']
    #allocation4 [shape = 's32[1]{0}', space=sflag, size = 0x4, scoped, tag = 'scoped memory for tpu_custom_call.1']
    #allocation5 [shape = 's32[1]{0}', space=sflag, size = 0x4, scoped, tag = 'scoped memory for tpu_custom_call.1']
    #allocation6 [shape = 'u8[262144]{0}', space=vmem, size = 0x40000, scoped, tag = 'input window, operand 1, single buffered']
    #allocation7 [shape = 's32[1]{0}', space=sflag, size = 0x4, scoped, tag = 'scoped memory for tpu_custom_call.1']
    #allocation8 [shape = 'u8[2048]{0}', space=vmem, size = 0x800, scoped, tag = 'output window, operand 0, single buffered']
    %9 = vsyncpa [#allocation4], 0
    %10 = vsyncpa [#allocation7], 0
    %11 = vsyncpa [#allocation5], 0
    // Predicated region
    $region2: #{tpu_custom_call.1} parent=1 // pred_check
      _
    $region3: #{tpu_custom_call.1} parent=1 // pred_check_branch
      %13 = sbr.rel (0) target = $region5
    $region4: #{tpu_custom_call.1} parent=1 // pred_region
      %s15 = ssub.s32 256, 256
      %16 = vsyncadd [#allocation4], %s15
      %s17 = sshll.u32 [#allocation3], 4
      %s18 = int_to_ptr.vmem [resolvable:$true] %s17
      %23 = dma.hbm_to_vmem [thread:$0]  %s0, 256, %s18, [#allocation4], 128, 128, 8
    $region5: #{tpu_custom_call.1} parent=1 // pred_fallthru
      _
    // Predicated region
    $region6: #{tpu_custom_call.1} parent=1 // pred_check
      _
    $region7: #{tpu_custom_call.1} parent=1 // pred_check_branch
      %25 = sbr.rel (0) target = $region9
    $region8: #{tpu_custom_call.1} parent=1 // pred_region
      %s27 = ssub.s32 8192, 8192
      %28 = vsyncadd [#allocation7], %s27
      %s29 = sshll.u32 [#allocation6], 4
      %s30 = int_to_ptr.vmem [resolvable:$true] %s29
      %35 = dma.hbm_to_vmem [thread:$0]  %s1, 8192, %s30, [#allocation7], 128, 128, 8
    $region9: #{tpu_custom_call.1} parent=1 // pred_fallthru
      _
    // Predicated region
    $region10: #{tpu_custom_call.1} parent=1 // pred_check
      _
    $region11: #{tpu_custom_call.1} parent=1 // pred_check_branch
      %37 = sbr.rel (0) target = $region13
    $region12: #{tpu_custom_call.1} parent=1 // pred_region
      _
    $region13: #{tpu_custom_call.1} parent=1 // pred_fallthru
      _
    // Predicated region
    $region14: #{tpu_custom_call.1} parent=1 // pred_check
      _
    $region15: #{tpu_custom_call.1} parent=1 // pred_check_branch
      %39 = sbr.rel (0) target = $region17
    $region16: #{tpu_custom_call.1} parent=1 // pred_region
      %40 = dma.done [#allocation4], 256
    $region17: #{tpu_custom_call.1} parent=1 // pred_fallthru
      _
    // Predicated region
    $region18: #{tpu_custom_call.1} parent=1 // pred_check
      _
    $region19: #{tpu_custom_call.1} parent=1 // pred_check_branch
      %42 = sbr.rel (0) target = $region21
    $region20: #{tpu_custom_call.1} parent=1 // pred_region
      %43 = dma.done [#allocation7], 8192
    $region21: #{tpu_custom_call.1} parent=1 // pred_fallthru
      _
    %v44 = vld [vmem:[#allocation3] sm:$0xff]
    %v45 = vld [vmem:[#allocation3 + $0x8] sm:$0xff]
    %v48 = vcombine.high %v44, %v44
    %v49 = vcombine.high %v45, %v45
    %vm52 = vcmask 1043456
    %v53 = vsel %vm52, %v44, 0.0
    %v54 = vrot.slane %v53, 4
    %v55 = vadd.f32 %v53, %v54
    %v56 = vrot.slane %v55, 2
    %v57 = vadd.f32 %v55, %v56
    %v58 = vrot.slane %v57, 1
    %v59 = vadd.f32 %v57, %v58
    %v60 = vsel %vm52, %v48, 0.0
    %v61 = vrot.slane %v60, 4
    %v62 = vadd.f32 %v60, %v61
    %v63 = vrot.slane %v62, 2
    %v64 = vadd.f32 %v62, %v63
    %v65 = vrot.slane %v64, 1
    %v66 = vadd.f32 %v64, %v65
    %v67 = vsel %vm52, %v45, 0.0
    %v68 = vrot.slane %v67, 4
    %v69 = vadd.f32 %v67, %v68
    %v70 = vrot.slane %v69, 2
    %v71 = vadd.f32 %v69, %v70
    %v72 = vrot.slane %v71, 1
    %v73 = vadd.f32 %v71, %v72
    %v74 = vsel %vm52, %v49, 0.0
    %v75 = vrot.slane %v74, 4
    %v76 = vadd.f32 %v74, %v75
    %v77 = vrot.slane %v76, 2
    %v78 = vadd.f32 %v76, %v77
    %v79 = vrot.slane %v78, 1
    %v80 = vadd.f32 %v78, %v79
    %v81 = vrcp.pop 4.0
    %v82 = vmul.f32 %v59, %v81
    %v83 = vmul.f32 %v66, %v81
    %v84 = vmul.f32 %v73, %v81
    %v85 = vmul.f32 %v80, %v81
    %v86 = vsel %vm52, %v44, -inf
    %v87 = vrot.slane %v86, 4
    %v88 = vmax.f32 %v86, %v87
    %v89 = vrot.slane %v88, 2
    %v90 = vmax.f32 %v88, %v89
    %v91 = vrot.slane %v90, 1
    %v92 = vmax.f32 %v90, %v91
    %v93 = vsel %vm52, %v48, -inf
    %v94 = vrot.slane %v93, 4
    %v95 = vmax.f32 %v93, %v94
    %v96 = vrot.slane %v95, 2
    %v97 = vmax.f32 %v95, %v96
    %v98 = vrot.slane %v97, 1
    %v99 = vmax.f32 %v97, %v98
    %v100 = vsel %vm52, %v45, -inf
    %v101 = vrot.slane %v100, 4
    %v102 = vmax.f32 %v100, %v101
    %v103 = vrot.slane %v102, 2
    %v104 = vmax.f32 %v102, %v103
    %v105 = vrot.slane %v104, 1
    %v106 = vmax.f32 %v104, %v105
    %v107 = vsel %vm52, %v49, -inf
    %v108 = vrot.slane %v107, 4
    %v109 = vmax.f32 %v107, %v108
    %v110 = vrot.slane %v109, 2
    %v111 = vmax.f32 %v109, %v110
    %v112 = vrot.slane %v111, 1
    %v113 = vmax.f32 %v111, %v112
    %vm118 = vcmask 1041409
    %v119 = vsel %vm118, %v84, %v82
    %v120 = vsel %vm118, %v85, %v83
    %v127 = vsel %vm118, %v106, %v92
    %v128 = vsel %vm118, %v113, %v99
    %v131 = vpack.c.bf16 %v119, %v119
    %v132 = vpack.c.bf16 %v120, %v120
    %v133 = vpack.c.bf16 %v127, %v127
    %v134 = vpack.c.bf16 %v128, %v128
    %v135 = vld [vmem:[#allocation6] sm:$0xff]
    %v136 = vld [vmem:[#allocation6 + $0x8] sm:$0xff]
    %v137 = vld [vmem:[#allocation6 + $0x10] sm:$0xff]
    %v138 = vld [vmem:[#allocation6 + $0x18] sm:$0xff]
    %v139 = vld [vmem:[#allocation6 + $0x20] sm:$0xff]
    %v140 = vld [vmem:[#allocation6 + $0x28] sm:$0xff]
    %v141 = vld [vmem:[#allocation6 + $0x30] sm:$0xff]
    %v142 = vld [vmem:[#allocation6 + $0x38] sm:$0xff]
    %v143 = vld [vmem:[#allocation6 + $0x40] sm:$0xff]
    %v144 = vld [vmem:[#allocation6 + $0x48] sm:$0xff]
    %v145 = vld [vmem:[#allocation6 + $0x50] sm:$0xff]
    %v146 = vld [vmem:[#allocation6 + $0x58] sm:$0xff]
    %v147 = vld [vmem:[#allocation6 + $0x60] sm:$0xff]
    %v148 = vld [vmem:[#allocation6 + $0x68] sm:$0xff]
    %v149 = vld [vmem:[#allocation6 + $0x70] sm:$0xff]
    %v150 = vld [vmem:[#allocation6 + $0x78] sm:$0xff]
    %v151 = vld [vmem:[#allocation6 + $0x80] sm:$0xff]
    %v152 = vld [vmem:[#allocation6 + $0x88] sm:$0xff]
    %v153 = vld [vmem:[#allocation6 + $0x90] sm:$0xff]
    %v154 = vld [vmem:[#allocation6 + $0x98] sm:$0xff]
    %v155 = vld [vmem:[#allocation6 + $0xa0] sm:$0xff]
    %v156 = vld [vmem:[#allocation6 + $0xa8] sm:$0xff]
    %v157 = vld [vmem:[#allocation6 + $0xb0] sm:$0xff]
    %v158 = vld [vmem:[#allocation6 + $0xb8] sm:$0xff]
    %v159 = vld [vmem:[#allocation6 + $0xc0] sm:$0xff]
    %v160 = vld [vmem:[#allocation6 + $0xc8] sm:$0xff]
    %v161 = vld [vmem:[#allocation6 + $0xd0] sm:$0xff]
    %v162 = vld [vmem:[#allocation6 + $0xd8] sm:$0xff]
    %v163 = vld [vmem:[#allocation6 + $0xe0] sm:$0xff]
    %v164 = vld [vmem:[#allocation6 + $0xe8] sm:$0xff]
    %v165 = vld [vmem:[#allocation6 + $0xf0] sm:$0xff]
    %v166 = vld [vmem:[#allocation6 + $0xf8] sm:$0xff]
    %v167 = vld [vmem:[#allocation6 + $0x100] sm:$0xff]
    %v168 = vld [vmem:[#allocation6 + $0x108] sm:$0xff]
    %v169 = vld [vmem:[#allocation6 + $0x110] sm:$0xff]
    %v170 = vld [vmem:[#allocation6 + $0x118] sm:$0xff]
    %v171 = vld [vmem:[#allocation6 + $0x120] sm:$0xff]
    %v172 = vld [vmem:[#allocation6 + $0x128] sm:$0xff]
    %v173 = vld [vmem:[#allocation6 + $0x130] sm:$0xff]
    %v174 = vld [vmem:[#allocation6 + $0x138] sm:$0xff]
    %v175 = vld [vmem:[#allocation6 + $0x140] sm:$0xff]
    %v176 = vld [vmem:[#allocation6 + $0x148] sm:$0xff]
    %v177 = vld [vmem:[#allocation6 + $0x150] sm:$0xff]
    %v178 = vld [vmem:[#allocation6 + $0x158] sm:$0xff]
    %v179 = vld [vmem:[#allocation6 + $0x160] sm:$0xff]
    %v180 = vld [vmem:[#allocation6 + $0x168] sm:$0xff]
    %v181 = vld [vmem:[#allocation6 + $0x170] sm:$0xff]
    %v182 = vld [vmem:[#allocation6 + $0x178] sm:$0xff]
    %v183 = vld [vmem:[#allocation6 + $0x180] sm:$0xff]
    %v184 = vld [vmem:[#allocation6 + $0x188] sm:$0xff]
    %v185 = vld [vmem:[#allocation6 + $0x190] sm:$0xff]
    %v186 = vld [vmem:[#allocation6 + $0x198] sm:$0xff]
    %v187 = vld [vmem:[#allocation6 + $0x1a0] sm:$0xff]
    %v188 = vld [vmem:[#allocation6 + $0x1a8] sm:$0xff]
    %v189 = vld [vmem:[#allocation6 + $0x1b0] sm:$0xff]
    %v190 = vld [vmem:[#allocation6 + $0x1b8] sm:$0xff]
    %v191 = vld [vmem:[#allocation6 + $0x1c0] sm:$0xff]
    %v192 = vld [vmem:[#allocation6 + $0x1c8] sm:$0xff]
    %v193 = vld [vmem:[#allocation6 + $0x1d0] sm:$0xff]
    %v194 = vld [vmem:[#allocation6 + $0x1d8] sm:$0xff]
    %v195 = vld [vmem:[#allocation6 + $0x1e0] sm:$0xff]
    %v196 = vld [vmem:[#allocation6 + $0x1e8] sm:$0xff]
    %v197 = vld [vmem:[#allocation6 + $0x1f0] sm:$0xff]
    %v198 = vld [vmem:[#allocation6 + $0x1f8] sm:$0xff]
    %s199 = sld [smem:[#allocation2]]
    %v200 = vstv %s199
    %v265 = vunpack.c.l.b16 %v135
    %v266 = vunpack.c.h.b16 %v135
    %v267 = vunpack.c.l.b16 %v136
    %v268 = vunpack.c.h.b16 %v136
    %v269 = vunpack.c.l.b16 %v137
    %v270 = vunpack.c.h.b16 %v137
    %v271 = vunpack.c.l.b16 %v138
    %v272 = vunpack.c.h.b16 %v138
    %v273 = vunpack.c.l.b16 %v139
    %v274 = vunpack.c.h.b16 %v139
    %v275 = vunpack.c.l.b16 %v140
    %v276 = vunpack.c.h.b16 %v140
    %v277 = vunpack.c.l.b16 %v141
    %v278 = vunpack.c.h.b16 %v141
    %v279 = vunpack.c.l.b16 %v142
    %v280 = vunpack.c.h.b16 %v142
    %v281 = vunpack.c.l.b16 %v143
    %v282 = vunpack.c.h.b16 %v143
    %v283 = vunpack.c.l.b16 %v144
    %v284 = vunpack.c.h.b16 %v144
    %v285 = vunpack.c.l.b16 %v145
    %v286 = vunpack.c.h.b16 %v145
    %v287 = vunpack.c.l.b16 %v146
    %v288 = vunpack.c.h.b16 %v146
    %v289 = vunpack.c.l.b16 %v147
    %v290 = vunpack.c.h.b16 %v147
    %v291 = vunpack.c.l.b16 %v148
    %v292 = vunpack.c.h.b16 %v148
    %v293 = vunpack.c.l.b16 %v149
    %v294 = vunpack.c.h.b16 %v149
    %v295 = vunpack.c.l.b16 %v150
    %v296 = vunpack.c.h.b16 %v150
    %v297 = vunpack.c.l.b16 %v151
    %v298 = vunpack.c.h.b16 %v151
    %v299 = vunpack.c.l.b16 %v152
    %v300 = vunpack.c.h.b16 %v152
    %v301 = vunpack.c.l.b16 %v153
    %v302 = vunpack.c.h.b16 %v153
    %v303 = vunpack.c.l.b16 %v154
    %v304 = vunpack.c.h.b16 %v154
    %v305 = vunpack.c.l.b16 %v155
    %v306 = vunpack.c.h.b16 %v155
    %v307 = vunpack.c.l.b16 %v156
    %v308 = vunpack.c.h.b16 %v156
    %v309 = vunpack.c.l.b16 %v157
    %v310 = vunpack.c.h.b16 %v157
    %v311 = vunpack.c.l.b16 %v158
    %v312 = vunpack.c.h.b16 %v158
    %v313 = vunpack.c.l.b16 %v159
    %v314 = vunpack.c.h.b16 %v159
    %v315 = vunpack.c.l.b16 %v160
    %v316 = vunpack.c.h.b16 %v160
    %v317 = vunpack.c.l.b16 %v161
    %v318 = vunpack.c.h.b16 %v161
    %v319 = vunpack.c.l.b16 %v162
    %v320 = vunpack.c.h.b16 %v162
    %v321 = vunpack.c.l.b16 %v163
    %v322 = vunpack.c.h.b16 %v163
    %v323 = vunpack.c.l.b16 %v164
    %v324 = vunpack.c.h.b16 %v164
    %v325 = vunpack.c.l.b16 %v165
    %v326 = vunpack.c.h.b16 %v165
    %v327 = vunpack.c.l.b16 %v166
    %v328 = vunpack.c.h.b16 %v166
    %v329 = vunpack.c.l.b16 %v167
    %v330 = vunpack.c.h.b16 %v167
    %v331 = vunpack.c.l.b16 %v168
    %v332 = vunpack.c.h.b16 %v168
    %v333 = vunpack.c.l.b16 %v169
    %v334 = vunpack.c.h.b16 %v169
    %v335 = vunpack.c.l.b16 %v170
    %v336 = vunpack.c.h.b16 %v170
    %v337 = vunpack.c.l.b16 %v171
    %v338 = vunpack.c.h.b16 %v171
    %v339 = vunpack.c.l.b16 %v172
    %v340 = vunpack.c.h.b16 %v172
    %v341 = vunpack.c.l.b16 %v173
    %v342 = vunpack.c.h.b16 %v173
    %v343 = vunpack.c.l.b16 %v174
    %v344 = vunpack.c.h.b16 %v174
    %v345 = vunpack.c.l.b16 %v175
    %v346 = vunpack.c.h.b16 %v175
    %v347 = vunpack.c.l.b16 %v176
    %v348 = vunpack.c.h.b16 %v176
    %v349 = vunpack.c.l.b16 %v177
    %v350 = vunpack.c.h.b16 %v177
    %v351 = vunpack.c.l.b16 %v178
    %v352 = vunpack.c.h.b16 %v178
    %v353 = vunpack.c.l.b16 %v179
    %v354 = vunpack.c.h.b16 %v179
    %v355 = vunpack.c.l.b16 %v180
    %v356 = vunpack.c.h.b16 %v180
    %v357 = vunpack.c.l.b16 %v181
    %v358 = vunpack.c.h.b16 %v181
    %v359 = vunpack.c.l.b16 %v182
    %v360 = vunpack.c.h.b16 %v182
    %v361 = vunpack.c.l.b16 %v183
    %v362 = vunpack.c.h.b16 %v183
    %v363 = vunpack.c.l.b16 %v184
    %v364 = vunpack.c.h.b16 %v184
    %v365 = vunpack.c.l.b16 %v185
    %v366 = vunpack.c.h.b16 %v185
    %v367 = vunpack.c.l.b16 %v186
    %v368 = vunpack.c.h.b16 %v186
    %v369 = vunpack.c.l.b16 %v187
    %v370 = vunpack.c.h.b16 %v187
    %v371 = vunpack.c.l.b16 %v188
    %v372 = vunpack.c.h.b16 %v188
    %v373 = vunpack.c.l.b16 %v189
    %v374 = vunpack.c.h.b16 %v189
    %v375 = vunpack.c.l.b16 %v190
    %v376 = vunpack.c.h.b16 %v190
    %v377 = vunpack.c.l.b16 %v191
    %v378 = vunpack.c.h.b16 %v191
    %v379 = vunpack.c.l.b16 %v192
    %v380 = vunpack.c.h.b16 %v192
    %v381 = vunpack.c.l.b16 %v193
    %v382 = vunpack.c.h.b16 %v193
    %v383 = vunpack.c.l.b16 %v194
    %v384 = vunpack.c.h.b16 %v194
    %v385 = vunpack.c.l.b16 %v195
    %v386 = vunpack.c.h.b16 %v195
    %v387 = vunpack.c.l.b16 %v196
    %v388 = vunpack.c.h.b16 %v196
    %v389 = vunpack.c.l.b16 %v197
    %v390 = vunpack.c.h.b16 %v197
    %v391 = vunpack.c.l.b16 %v198
    %v392 = vunpack.c.h.b16 %v198
    %v393 = vpack.c.b16 %v267, %v265
    %v394 = vpack.c.b16 %v268, %v266
    %v395 = vpack.c.b16 %v271, %v269
    %v396 = vpack.c.b16 %v272, %v270
    %v397 = vpack.c.b16 %v275, %v273
    %v398 = vpack.c.b16 %v276, %v274
    %v399 = vpack.c.b16 %v279, %v277
    %v400 = vpack.c.b16 %v280, %v278
    %v401 = vpack.c.b16 %v283, %v281
    %v402 = vpack.c.b16 %v284, %v282
    %v403 = vpack.c.b16 %v287, %v285
    %v404 = vpack.c.b16 %v288, %v286
    %v405 = vpack.c.b16 %v291, %v289
    %v406 = vpack.c.b16 %v292, %v290
    %v407 = vpack.c.b16 %v295, %v293
    %v408 = vpack.c.b16 %v296, %v294
    %v409 = vpack.c.b16 %v299, %v297
    %v410 = vpack.c.b16 %v300, %v298
    %v411 = vpack.c.b16 %v303, %v301
    %v412 = vpack.c.b16 %v304, %v302
    %v413 = vpack.c.b16 %v307, %v305
    %v414 = vpack.c.b16 %v308, %v306
    %v415 = vpack.c.b16 %v311, %v309
    %v416 = vpack.c.b16 %v312, %v310
    %v417 = vpack.c.b16 %v315, %v313
    %v418 = vpack.c.b16 %v316, %v314
    %v419 = vpack.c.b16 %v319, %v317
    %v420 = vpack.c.b16 %v320, %v318
    %v421 = vpack.c.b16 %v323, %v321
    %v422 = vpack.c.b16 %v324, %v322
    %v423 = vpack.c.b16 %v327, %v325
    %v424 = vpack.c.b16 %v328, %v326
    %v425 = vpack.c.b16 %v331, %v329
    %v426 = vpack.c.b16 %v332, %v330
    %v427 = vpack.c.b16 %v335, %v333
    %v428 = vpack.c.b16 %v336, %v334
    %v429 = vpack.c.b16 %v339, %v337
    %v430 = vpack.c.b16 %v340, %v338
    %v431 = vpack.c.b16 %v343, %v341
    %v432 = vpack.c.b16 %v344, %v342
    %v433 = vpack.c.b16 %v347, %v345
    %v434 = vpack.c.b16 %v348, %v346
    %v435 = vpack.c.b16 %v351, %v349
    %v436 = vpack.c.b16 %v352, %v350
    %v437 = vpack.c.b16 %v355, %v353
    %v438 = vpack.c.b16 %v356, %v354
    %v439 = vpack.c.b16 %v359, %v357
    %v440 = vpack.c.b16 %v360, %v358
    %v441 = vpack.c.b16 %v363, %v361
    %v442 = vpack.c.b16 %v364, %v362
    %v443 = vpack.c.b16 %v367, %v365
    %v444 = vpack.c.b16 %v368, %v366
    %v445 = vpack.c.b16 %v371, %v369
    %v446 = vpack.c.b16 %v372, %v370
    %v447 = vpack.c.b16 %v375, %v373
    %v448 = vpack.c.b16 %v376, %v374
    %v449 = vpack.c.b16 %v379, %v377
    %v450 = vpack.c.b16 %v380, %v378
    %v451 = vpack.c.b16 %v383, %v381
    %v452 = vpack.c.b16 %v384, %v382
    %v453 = vpack.c.b16 %v387, %v385
    %v454 = vpack.c.b16 %v388, %v386
    %v455 = vpack.c.b16 %v391, %v389
    %v456 = vpack.c.b16 %v392, %v390
    %521 = vmatprep.subr.bf16.mxu0 %v394
    %522 = vmatpush1.bf16.msra.mxu0 %v393
    %523 = vmatprep.subr.bf16.mxu0 %v396
    %524 = vmatpush1.bf16.msra.mxu0 %v395
    %525 = vmatprep.subr.bf16.mxu0 %v398
    %526 = vmatpush1.bf16.msra.mxu0 %v397
    %527 = vmatprep.subr.bf16.mxu0 %v400
    %528 = vmatpush1.bf16.msra.mxu0 %v399
    %529 = vmatprep.subr.bf16.mxu0 %v402
    %530 = vmatpush1.bf16.msra.mxu0 %v401
    %531 = vmatprep.subr.bf16.mxu0 %v404
    %532 = vmatpush1.bf16.msra.mxu0 %v403
    %533 = vmatprep.subr.bf16.mxu0 %v406
    %534 = vmatpush1.bf16.msra.mxu0 %v405
    %535 = vmatprep.subr.bf16.mxu0 %v408
    %536 = vmatpush1.bf16.msra.mxu0 %v407
    %537 = vmatprep.subr.bf16.mxu0 %v410
    %538 = vmatpush1.bf16.msra.mxu0 %v409
    %539 = vmatprep.subr.bf16.mxu0 %v412
    %540 = vmatpush1.bf16.msra.mxu0 %v411
    %541 = vmatprep.subr.bf16.mxu0 %v414
    %542 = vmatpush1.bf16.msra.mxu0 %v413
    %543 = vmatprep.subr.bf16.mxu0 %v416
    %544 = vmatpush1.bf16.msra.mxu0 %v415
    %545 = vmatprep.subr.bf16.mxu0 %v418
    %546 = vmatpush1.bf16.msra.mxu0 %v417
    %547 = vmatprep.subr.bf16.mxu0 %v420
    %548 = vmatpush1.bf16.msra.mxu0 %v419
    %549 = vmatprep.subr.bf16.mxu0 %v422
    %550 = vmatpush1.bf16.msra.mxu0 %v421
    %551 = vmatprep.subr.bf16.mxu0 %v424
    %552 = vmatpush1.bf16.msra.mxu0 %v423
    %553 = vmatprep.mubr.bf16.mxu0 %v132
    %554 = vmatmul.mubr.bf16.gmra.mrb[0].mxu0 %v131
    %v555 = vpop.f32.mrb[0].mxu0
    %v556 = vadd.f32 %v200, %v555
    %v557 = vpop.f32.mrb[0].mxu0
    %v558 = vadd.f32 %v200, %v557
    %v559 = vpop.f32.mrb[0].mxu0
    %v560 = vpop.f32.mrb[0].mxu0
    %561 = vdwg.mxu0
    %562 = vmatprep.subr.bf16.mxu0 %v426
    %563 = vmatpush1.bf16.msra.mxu0 %v425
    %564 = vmatprep.subr.bf16.mxu0 %v428
    %565 = vmatpush1.bf16.msra.mxu0 %v427
    %566 = vmatprep.subr.bf16.mxu0 %v430
    %567 = vmatpush1.bf16.msra.mxu0 %v429
    %568 = vmatprep.subr.bf16.mxu0 %v432
    %569 = vmatpush1.bf16.msra.mxu0 %v431
    %570 = vmatprep.subr.bf16.mxu0 %v434
    %571 = vmatpush1.bf16.msra.mxu0 %v433
    %572 = vmatprep.subr.bf16.mxu0 %v436
    %573 = vmatpush1.bf16.msra.mxu0 %v435
    %574 = vmatprep.subr.bf16.mxu0 %v438
    %575 = vmatpush1.bf16.msra.mxu0 %v437
    %576 = vmatprep.subr.bf16.mxu0 %v440
    %577 = vmatpush1.bf16.msra.mxu0 %v439
    %578 = vmatprep.subr.bf16.mxu0 %v442
    %579 = vmatpush1.bf16.msra.mxu0 %v441
    %580 = vmatprep.subr.bf16.mxu0 %v444
    %581 = vmatpush1.bf16.msra.mxu0 %v443
    %582 = vmatprep.subr.bf16.mxu0 %v446
    %583 = vmatpush1.bf16.msra.mxu0 %v445
    %584 = vmatprep.subr.bf16.mxu0 %v448
    %585 = vmatpush1.bf16.msra.mxu0 %v447
    %586 = vmatprep.subr.bf16.mxu0 %v450
    %587 = vmatpush1.bf16.msra.mxu0 %v449
    %588 = vmatprep.subr.bf16.mxu0 %v452
    %589 = vmatpush1.bf16.msra.mxu0 %v451
    %590 = vmatprep.subr.bf16.mxu0 %v454
    %591 = vmatpush1.bf16.msra.mxu0 %v453
    %592 = vmatprep.subr.bf16.mxu0 %v456
    %593 = vmatpush1.bf16.msra.mxu0 %v455
    %594 = vmatprep.mubr.bf16.mxu0 %v134
    %595 = vmatmul.mubr.bf16.gmra.mrb[0].mxu0 %v133
    %v596 = vpop.f32.mrb[0].mxu0
    %v597 = vadd.f32 %v556, %v596
    %v598 = vpop.f32.mrb[0].mxu0
    %v599 = vadd.f32 %v558, %v598
    %v600 = vpop.f32.mrb[0].mxu0
    %v601 = vpop.f32.mrb[0].mxu0
    %602 = vdwg.mxu0
    %v603 = vxor.u32 %v597, 2147483648
    %v604 = vxor.u32 %v599, 2147483648
    %v605 = vmul.f32 %v603, 1.442695
    %v606 = vpow.pop %v605
    %v607 = vmul.f32 %v604, 1.442695
    %v608 = vpow.pop %v607
    %v609 = vadd.f32 %v606, 1.0
    %v610 = vadd.f32 %v608, 1.0
    %v611 = vrcp.pop %v609
    %v612 = vmul.f32 1.0, %v611
    %v613 = vrcp.pop %v610
    %v614 = vmul.f32 1.0, %v613
    %v617 = vcombine.low %v612, %v614
    %v619 = vunpack.c.l.s4 1983009808
    %v620 = vunpack.c.0.s8 %v619
    %v621 = vlaneseq
    %v622 = vshrl.u32 %v621, 7
    %v623 = vsub.s32 %v620, %v622
    %v624 = vrot.slane %v617, %v623
    %626 = vst [vmem:[#allocation8] sm:$0xf] %v624
    // Predicated region
    $region22: #{tpu_custom_call.1} parent=1 // pred_check
      _
    $region23: #{tpu_custom_call.1} parent=1 // pred_check_branch
      %628 = sbr.rel (0) target = $region25
    $region24: #{tpu_custom_call.1} parent=1 // pred_region
      %s630 = ssub.s32 64, 64
      %631 = vsyncadd [#allocation5], %s630
      %s633 = sshll.u32 [#allocation8], 4
      %s634 = int_to_ptr.vmem [resolvable:$true] %s633
      %636 = dma.vmem_to_hbm [thread:$0]  %s634, 64, %s3, [#allocation5]
    $region25: #{tpu_custom_call.1} parent=1 // pred_fallthru
      _
    // Predicated region
    $region26: #{tpu_custom_call.1} parent=1 // pred_check
      _
    $region27: #{tpu_custom_call.1} parent=1 // pred_check_branch
      %638 = sbr.rel (0) target = $region29
    $region28: #{tpu_custom_call.1} parent=1 // pred_region
      %639 = dma.done [#allocation5], 64
    $region29: #{tpu_custom_call.1} parent=1 // pred_fallthru
      _
    %640 = vsyncpa [#allocation4], 1
    %641 = vsyncpa [#allocation7], 1
    %642 = vsyncpa [#allocation5], 1

</llo_original>
